<compile_context>
chip_gen: v5e
topology: v5e:2x2
jax: 0.10.0
libtpu: 0.0.40
codegen_flags: <defaults>
</compile_context>

<pallas_src>
import math
import functools
import jax
import jax.numpy as jnp
from jax.experimental import pallas as pl
from jax.experimental.pallas import tpu as pltpu


# ----------------------------------------------------------------------------
# Kernel: one (tile_m, Np) output block = x_tile(f32->bf16) @ W(bf16) + bias.
# The weight / bias blocks are grid-invariant (VMEM resident).
# ----------------------------------------------------------------------------
def qkv_matmul_bias_kernel(x_ref, w_ref, b_ref, o_ref):
    acc = jnp.dot(x_ref[...].astype(jnp.bfloat16), w_ref[...],
                  preferred_element_type=jnp.float32)
    o_ref[...] = (acc + b_ref[...]).astype(o_ref.dtype)


def _round_up(a, b):
    return ((a + b - 1) // b) * b


def _vmem_limit_bytes():
    # Raise the scoped-VMEM limit above the 16/32 MiB default but stay well
    # under physical capacity (64 MiB/TC on v7x, 128 MiB on v5e/v6e).
    try:
        cap = int(pltpu.get_tpu_info().vmem_capacity_bytes)
    except Exception:
        cap = 64 * 1024 * 1024
    return min(96 * 1024 * 1024, (cap * 3) // 4)


def _default_tile_m():
    # 128 MiB VMEM (v5e/v6e): tile_m=1024; 64 MiB (v7x): tile_m=512.
    try:
        cap = int(pltpu.get_tpu_info().vmem_capacity_bytes)
    except Exception:
        cap = 64 * 1024 * 1024
    return 1024 if cap >= 100 * 1024 * 1024 else 512


def _pick_tile_m(M, requested):
    tm = requested if requested is not None else _default_tile_m()
    # Keep at least 2 tiles along the parallel M axis when possible (v7x has
    # two TensorCores), and keep the sublane dim a multiple of 8.
    tm = min(tm, max(8, _round_up(pl.cdiv(M, 2), 8)))
    return tm


# ----------------------------------------------------------------------------
# One-time preparation: fold the FacT branches into the base qkv weight
# (exact in eval mode), cast to bf16, pad N to a lane-dense multiple of 128.
# Call once; reuse (w_bf, b_f32, n_out) across forward calls.
# ----------------------------------------------------------------------------
def fold_fact_params(params):
    D = params["factu"].shape[0]
    N3 = params["w_qkv"].shape[1]
    delta_q = params["factu"] @ params["q_facts"] @ params["factv"]   # (D, D)
    delta_v = params["factu"] @ params["v_facts"] @ params["factv"]   # (D, D)
    w_eff = params["w_qkv"]
    w_eff = w_eff.at[:, :D].add(delta_q)
    w_eff = w_eff.at[:, N3 - D:].add(delta_v)

    Np = _round_up(N3, 128)
    w_bf = w_eff.astype(jnp.bfloat16)
    b_f32 = params["b_qkv"].astype(jnp.float32)
    if Np != N3:
        w_bf = jnp.pad(w_bf, ((0, 0), (0, Np - N3)))
        b_f32 = jnp.pad(b_f32, ((0, 0), (0, Np - N3)))
    return w_bf, b_f32, N3


# ----------------------------------------------------------------------------
# Per-call forward: a single weight-resident matmul + bias pallas_call.
# ----------------------------------------------------------------------------
@functools.partial(jax.jit, static_argnames=("n_out", "tile_m", "out_dtype"))
def fact_qkv_forward(x, w_bf, b_f32, *, n_out, tile_m=None,
                     out_dtype=jnp.float32):
    """x: (B, H, W, D). Returns (B, H, W, n_out) in out_dtype."""
    B, H, W, D = x.shape
    M = B * H * W
    Np = w_bf.shape[1]

    x2d = x.reshape(M, D)
    tm = _pick_tile_m(M, tile_m)
    grid_m = pl.cdiv(M, tm)

    out_itemsize = jnp.dtype(out_dtype).itemsize
    cost = pl.CostEstimate(
        flops=2 * M * D * Np,
        transcendentals=0,
        bytes_accessed=(x2d.size * x2d.dtype.itemsize
                        + w_bf.size * 2 + b_f32.size * 4
                        + M * Np * out_itemsize),
    )

    out = pl.pallas_call(
        qkv_matmul_bias_kernel,
        out_shape=jax.ShapeDtypeStruct((M, Np), out_dtype),
        grid=(grid_m,),
        in_specs=[
            pl.BlockSpec((tm, D), lambda i: (i, 0)),    # x tile (f32, cast in-kernel)
            pl.BlockSpec((D, Np), lambda i: (0, 0)),    # folded weight, VMEM resident
            pl.BlockSpec((1, Np), lambda i: (0, 0)),    # bias, VMEM resident
        ],
        out_specs=pl.BlockSpec((tm, Np), lambda i: (i, 0)),
        compiler_params=pltpu.CompilerParams(
            dimension_semantics=("parallel",),
            vmem_limit_bytes=_vmem_limit_bytes(),
        ),
        cost_estimate=cost,
    )(x2d, w_bf, b_f32)

    if Np != n_out:
        out = out[:, :n_out]
    return out.reshape(B, H, W, n_out)


# ----------------------------------------------------------------------------
# Parameter init mirroring the PyTorch module (all nn.Linear default init,
# kaiming_uniform(a=sqrt(5)) == U(-1/sqrt(fan_in), 1/sqrt(fan_in))).
# Weights stored pre-transposed to (in_features, out_features).
# ----------------------------------------------------------------------------
def init_params(key, dim, rank):
    ks = jax.random.split(key, 6)

    def kuniform(k, fan_in, shape):
        bound = 1.0 / math.sqrt(fan_in)
        return jax.random.uniform(k, shape, jnp.float32, -bound, bound)

    return {
        # base qkv projection (Linear(dim, 3*dim, bias=True))
        "w_qkv": kuniform(ks[0], dim, (dim, 3 * dim)),
        "b_qkv": kuniform(ks[1], dim, (1, 3 * dim)),
        # FacT adapters (all bias=False)
        "factu": kuniform(ks[2], dim, (dim, rank)),      # FacTu: dim -> rank
        "q_facts": kuniform(ks[3], rank, (rank, rank)),  # q_FacTs: rank -> rank
        "v_facts": kuniform(ks[4], rank, (rank, rank)),  # v_FacTs: rank -> rank
        "factv": kuniform(ks[5], rank, (rank, dim)),     # FacTv: rank -> dim
    }


# ----------------------------------------------------------------------------
# Pure-JAX reference of the ORIGINAL (unfolded) forward, f32, eval-mode dropout.
# ----------------------------------------------------------------------------
def reference_forward(x, p):
    B, H, W, D = x.shape
    x2 = x.reshape(-1, D)
    qkv = x2 @ p["w_qkv"] + p["b_qkv"]                         # (M, 3D)
    u = x2 @ p["factu"]                                        # (M, r)
    new_q = (u @ p["q_facts"]) @ p["factv"]                    # (M, D)
    new_v = (u @ p["v_facts"]) @ p["factv"]                    # (M, D)
    out = jnp.concatenate(
        [qkv[:, :D] + new_q, qkv[:, D:2 * D], qkv[:, 2 * D:] + new_v], axis=-1)
    return out.reshape(B, H, W, 3 * D)


if __name__ == "__main__":
    batch, spatial, dim, rank = 2, 8, 128, 4   # x: (B, H, W, dim) as in SAM blocks

    key = jax.random.PRNGKey(0)
    kx, kp = jax.random.split(key)
    x = jax.random.normal(kx, (batch, spatial, spatial, dim), jnp.float32)
    params = init_params(kp, dim, rank)

    # One-time fold (hoisted out of the per-call path).
    w_bf, b_f32, n_out = fold_fact_params(params)
    w_bf = jax.block_until_ready(w_bf)

    out = fact_qkv_forward(x, w_bf, b_f32, n_out=n_out)
    out = jax.block_until_ready(out)

    ref = reference_forward(x, params)
    assert out.shape == (batch, spatial, spatial, 3 * dim)
    # Loose tolerance only because the kernel does its matmul in bf16 (f32 acc).
    assert jnp.allclose(out, ref, atol=5e-2, rtol=5e-2)

    print("KERNEL_OK")
</pallas_src>

<mosaic_0001>
module attributes {stable_mosaic.version = 11 : i64} {
  func.func @qkv_matmul_bias_kernel(%arg0: i32, %arg1: memref<64x128xf32, #tpu.memory_space<vmem>>, %arg2: memref<128x384xbf16, #tpu.memory_space<vmem>>, %arg3: memref<1x384xf32, #tpu.memory_space<vmem>>, %arg4: memref<64x384xf32, #tpu.memory_space<vmem>>) attributes {dimension_semantics = [#tpu.dimension_semantics<parallel>], iteration_bounds = array<i64: 2>, scalar_prefetch = 0 : i64, scratch_operands = 0 : i64, tpu.core_type = #tpu.core_type<tc>, window_params = [{transform_indices = @transform_0, window_bounds = array<i64: 64, 128>}, {pipeline_mode = #tpu.pipeline_mode<synchronous>, transform_indices = @transform_1, window_bounds = array<i64: 128, 384>}, {pipeline_mode = #tpu.pipeline_mode<synchronous>, transform_indices = @transform_2, window_bounds = array<i64: 1, 384>}, {transform_indices = @transform_3, window_bounds = array<i64: 64, 384>}]} {
    %c0 = arith.constant 0 : index
    %c0_0 = arith.constant 0 : index
    %0 = vector.load %arg1[%c0, %c0_0] : memref<64x128xf32, #tpu.memory_space<vmem>>, vector<64x128xf32>
    %1 = arith.truncf %0 : vector<64x128xf32> to vector<64x128xbf16>
    %c0_1 = arith.constant 0 : index
    %c0_2 = arith.constant 0 : index
    %2 = vector.load %arg2[%c0_1, %c0_2] : memref<128x384xbf16, #tpu.memory_space<vmem>>, vector<128x384xbf16>
    %cst = arith.constant dense<0.000000e+00> : vector<64x384xf32>
    %3 = tpu.matmul %1, %2, %cst {dimension_numbers = #tpu.dot_dimension_numbers<[1], [0], [0], [1], [0, 0, 1, 1], [], []>} : vector<64x128xbf16>, vector<128x384xbf16>, vector<64x384xf32> -> vector<64x384xf32>
    %c0_3 = arith.constant 0 : index
    %c0_4 = arith.constant 0 : index
    %4 = vector.load %arg3[%c0_3, %c0_4] : memref<1x384xf32, #tpu.memory_space<vmem>>, vector<1x384xf32>
    %5 = vector.broadcast %4 : vector<1x384xf32> to vector<64x384xf32>
    %6 = arith.addf %3, %5 : vector<64x384xf32>
    %c0_5 = arith.constant 0 : index
    %c0_6 = arith.constant 0 : index
    %7 = vector.load %arg4[%c0_5, %c0_6] : memref<64x384xf32, #tpu.memory_space<vmem>>, vector<64x384xf32>
    tpu.vector_store %arg4[%c0_5, %c0_6], %6 {strides = array<i32>} : memref<64x384xf32, #tpu.memory_space<vmem>>, vector<64x384xf32>,
    return
  }
  func.func @transform_0(%arg0: i32) -> (i32, i32) {
    %c0_i32 = arith.constant 0 : i32
    %c0_i32_0 = arith.constant 0 : i32
    return %arg0, %c0_i32 : i32, i32
  }
  func.func @transform_1(%arg0: i32) -> (i32, i32) {
    %c0_i32 = arith.constant 0 : i32
    %c0_i32_0 = arith.constant 0 : i32
    %c0_i32_1 = arith.constant 0 : i32
    return %c0_i32, %c0_i32_0 : i32, i32
  }
  func.func @transform_2(%arg0: i32) -> (i32, i32) {
    %c0_i32 = arith.constant 0 : i32
    %c0_i32_0 = arith.constant 0 : i32
    %c0_i32_1 = arith.constant 0 : i32
    return %c0_i32, %c0_i32_0 : i32, i32
  }
  func.func @transform_3(%arg0: i32) -> (i32, i32) {
    %c0_i32 = arith.constant 0 : i32
    %c0_i32_0 = arith.constant 0 : i32
    return %arg0, %c0_i32 : i32, i32
  }
}

</mosaic_0001>

<llo_original>
// kernel: fact_qkv_forward.1
$region0: #{fact_qkv_forward.1}
  #allocation0 [shape = 'u32[]', space=smem, size = 0x4, offset = 0x4, fixed_abs, tag = 'smem constant byte address 0x4 - core index']
  #allocation1 [shape = 'u32[72,128]{1,0:T(1,128)}', space=vmem, size = 0x9000, scoped, tag = 'internal scratch']
  %s0 = inlined_call_operand.hbm [shape: f32[128,128], index: 0, kind: input, shape index: {}]
  %s1 = inlined_call_operand.hbm [shape: bf16[128,384], index: 1, kind: input, shape index: {}]
  %s2 = inlined_call_operand.hbm [shape: f32[1,384], index: 2, kind: input, shape index: {}]
  %s3 = inlined_call_operand.hbm [shape: f32[128,384], index: 3, kind: output, shape index: {}]
  %s4 = sld [smem:[#allocation0]]
  $region57: #{fact_qkv_forward.1} parent=0
    _
  %s6 = ssub.s32 1, %s4
  %s7 = scalar_select 0, %s6, %s4
  $region1: #{fact_qkv_forward.1} parent=0
    #allocation2 [shape = 'u8[65536]{0}', space=vmem, size = 0x10000, scoped, tag = 'input window, operand 0']
    #allocation3 [shape = 's32[2]{0}', space=sflag, size = 0x8, scoped, tag = 'scoped memory for fact_qkv_forward.1']
    #allocation4 [shape = 's32[2]{0}', space=sflag, size = 0x8, scoped, tag = 'scoped memory for fact_qkv_forward.1']
    #allocation5 [shape = 'u8[98304]{0}', space=vmem, size = 0x18000, scoped, tag = 'input window, operand 1, single buffered']
    #allocation6 [shape = 's32[1]{0}', space=sflag, size = 0x4, scoped, tag = 'scoped memory for fact_qkv_forward.1']
    #allocation7 [shape = 'u8[1536]{0}', space=vmem, size = 0x800, scoped, tag = 'input window, operand 2, single buffered']
    #allocation8 [shape = 'u8[196608]{0}', space=vmem, size = 0x30000, scoped, tag = 'output window, operand 0']
    %8 = vsyncpa [#allocation3], 0
    %s9 = scalar_lea.sflag [#allocation3], 1
    %10 = vsyncpa %s9, 0
    %11 = vsyncpa [#allocation6], 0
    %12 = vsyncpa [#allocation4], 0
    %s13 = scalar_lea.sflag [#allocation4], 1
    %14 = vsyncpa %s13, 0
    loop: start=0, step=1, limit=4
    $region2: #{fact_qkv_forward.1} parent=1 // loop_pre_header
      _
    $region3: #{fact_qkv_forward.1} parent=1 // loop_header
      %s16 = sphi 0, %s20
      %p17 = scmp.ge.s32.totalorder %s16, 4
      %s26 = sphi 0, %s28
      %s29 = sphi 0, %s26
      %s30 = sphi 0, %s29
      %s46 = sphi 0, %s30
      %s50 = sphi 0, %s50
      %s52 = sphi 0, %s50
      %s53 = sphi 0, %s52
      %s67 = sphi 0, %s53
      %s71 = sphi 0, %s71
      %s73 = sphi 0, %s71
      %s74 = sphi 0, %s73
      %s88 = sphi 0, %s74
      %s94 = sphi 0, %s96
      %s97 = sphi 0, %s94
      %s98 = sphi 0, %s97
      %s114 = sphi 0, %s98
    $region4: #{fact_qkv_forward.1} parent=1 // loop_header_branch
      %19 = sbr.rel (%p17) target = $region8
    $region5: #{fact_qkv_forward.1} parent=1 // loop_body
      %s21 = ssub.s32 %s16, 1
      %s22 = ssub.s32 %s16, 2
      %s23 = sadd.s32 %s16, 1
      %s24 = ssub.s32 %s16, %s23
      %p25 = scmp.eq.s32.totalorder %s24, 0
      %s27 = sadd.s32 %s26, 1
      %s28 = scalar_select %p25, %s26, %s27
      %p31 = pneg %p25
      %p32 = scmp.eq.s32.totalorder %s16, 1
      %p33 = por %p31, %p32
      %p34 = scmp.ne.s32.totalorder %s26, %s29
      %p35 = scmp.eq.s32.totalorder %s16, 0
      %p36 = por %p34, %p35
      %p37 = scmp.ne.s32.totalorder %s26, %s29
      %p38 = scmp.eq.s32.totalorder %s21, 1
      %p39 = por %p37, %p38
      %p40 = scmp.ne.s32.totalorder %s29, %s30
      %p41 = scmp.eq.s32.totalorder %s21, 0
      %p42 = por %p40, %p41
      %p43 = scmp.ne.s32.totalorder %s29, %s30
      %p44 = scmp.eq.s32.totalorder %s22, 1
      %p45 = por %p43, %p44
      %p47 = scmp.ne.s32.totalorder %s30, %s46
      %p48 = scmp.eq.s32.totalorder %s22, 0
      %p49 = por %p47, %p48
      %s51 = sadd.s32 %s50, 1
      %p54 = scmp.eq.s32.totalorder %s16, 1
      %p55 = scmp.ne.s32.totalorder %s50, %s52
      %p56 = scmp.eq.s32.totalorder %s16, 0
      %p57 = por %p55, %p56
      %p58 = scmp.ne.s32.totalorder %s50, %s52
      %p59 = scmp.eq.s32.totalorder %s21, 1
      %p60 = por %p58, %p59
      %p61 = scmp.ne.s32.totalorder %s52, %s53
      %p62 = scmp.eq.s32.totalorder %s21, 0
      %p63 = por %p61, %p62
      %p64 = scmp.ne.s32.totalorder %s52, %s53
      %p65 = scmp.eq.s32.totalorder %s22, 1
      %p66 = por %p64, %p65
      %p68 = scmp.ne.s32.totalorder %s53, %s67
      %p69 = scmp.eq.s32.totalorder %s22, 0
      %p70 = por %p68, %p69
      %s72 = sadd.s32 %s71, 1
      %p75 = scmp.eq.s32.totalorder %s16, 1
      %p76 = scmp.ne.s32.totalorder %s71, %s73
      %p77 = scmp.eq.s32.totalorder %s16, 0
      %p78 = por %p76, %p77
      %p79 = scmp.ne.s32.totalorder %s71, %s73
      %p80 = scmp.eq.s32.totalorder %s21, 1
      %p81 = por %p79, %p80
      %p82 = scmp.ne.s32.totalorder %s73, %s74
      %p83 = scmp.eq.s32.totalorder %s21, 0
      %p84 = por %p82, %p83
      %p85 = scmp.ne.s32.totalorder %s73, %s74
      %p86 = scmp.eq.s32.totalorder %s22, 1
      %p87 = por %p85, %p86
      %p89 = scmp.ne.s32.totalorder %s74, %s88
      %p90 = scmp.eq.s32.totalorder %s22, 0
      %p91 = por %p89, %p90
      %s92 = ssub.s32 %s16, %s23
      %p93 = scmp.eq.s32.totalorder %s92, 0
      %s95 = sadd.s32 %s94, 1
      %s96 = scalar_select %p93, %s94, %s95
      %p99 = pneg %p93
      %p100 = scmp.eq.s32.totalorder %s16, 1
      %p101 = por %p99, %p100
      %p102 = scmp.ne.s32.totalorder %s94, %s97
      %p103 = scmp.eq.s32.totalorder %s16, 0
      %p104 = por %p102, %p103
      %p105 = scmp.ne.s32.totalorder %s94, %s97
      %p106 = scmp.eq.s32.totalorder %s21, 1
      %p107 = por %p105, %p106
      %p108 = scmp.ne.s32.totalorder %s97, %s98
      %p109 = scmp.eq.s32.totalorder %s21, 0
      %p110 = por %p108, %p109
      %p111 = scmp.ne.s32.totalorder %s97, %s98
      %p112 = scmp.eq.s32.totalorder %s22, 1
      %p113 = por %p111, %p112
      %p115 = scmp.ne.s32.totalorder %s98, %s114
      %p116 = scmp.eq.s32.totalorder %s22, 0
      %p117 = por %p115, %p116
      %p118 = scmp.le.s32.totalorder 1, %s16
      %p119 = scmp.lt.s32.totalorder %s16, 3
      %p120 = pnand %p118, %p119
      %p121 = pneg %p120
      // Predicated region
      $region9: #{fact_qkv_forward.1} parent=5 // pred_check
        _
      $region10: #{fact_qkv_forward.1} parent=5 // pred_check_branch
        %123 = sbr.rel (%p120) target = $region12
      $region11: #{fact_qkv_forward.1} parent=5 // pred_region
        %s124 = ssub.s32 %s16, 1
        // Predicated region
        $region13: #{fact_qkv_forward.1} parent=11 // pred_check
          %p125 = pneg %p63
        $region14: #{fact_qkv_forward.1} parent=11 // pred_check_branch
          %127 = sbr.rel (%p125) target = $region16
        $region15: #{fact_qkv_forward.1} parent=11 // pred_region
          %129 = vsyncadd [#allocation6], 0
          %s130 = sshll.u32 %s1, 4
          %s131 = int_to_ptr.hbm [resolvable:$true] %s130
          %s132 = sshll.u32 [#allocation5], 4
          %s133 = int_to_ptr.vmem [resolvable:$true] %s132
          %138 = dma.hbm_to_vmem [thread:$0]  %s131, 3072, %s133, [#allocation6], 192, 192, 12
        $region16: #{fact_qkv_forward.1} parent=11 // pred_fallthru
          _
        // Predicated region
        $region17: #{fact_qkv_forward.1} parent=11 // pred_check
          %p139 = pneg %p84
        $region18: #{fact_qkv_forward.1} parent=11 // pred_check_branch
          %141 = sbr.rel (%p139) target = $region20
        $region19: #{fact_qkv_forward.1} parent=11 // pred_region
          %143 = vsyncadd [#allocation6], 0
          %s145 = sshll.u32 %s2, 4
          %s146 = int_to_ptr.hbm [resolvable:$true] %s145
          %s147 = sshll.u32 [#allocation7], 4
          %s148 = int_to_ptr.vmem [resolvable:$true] %s147
          %150 = dma.hbm_to_vmem [thread:$0]  %s146, 48, %s148, [#allocation6]
        $region20: #{fact_qkv_forward.1} parent=11 // pred_fallthru
          _
      $region12: #{fact_qkv_forward.1} parent=5 // pred_fallthru
        _
      %p151 = scmp.lt.s32.totalorder %s16, 2
      // Predicated region
      $region21: #{fact_qkv_forward.1} parent=5 // pred_check
        %p152 = pneg %p151
      $region22: #{fact_qkv_forward.1} parent=5 // pred_check_branch
        %154 = sbr.rel (%p152) target = $region24
      $region23: #{fact_qkv_forward.1} parent=5 // pred_region
        // Predicated region
        $region25: #{fact_qkv_forward.1} parent=23 // pred_check
          %p155 = pneg %p36
        $region26: #{fact_qkv_forward.1} parent=23 // pred_check_branch
          %157 = sbr.rel (%p155) target = $region28
        $region27: #{fact_qkv_forward.1} parent=23 // pred_region
          %s158 = sand.u32 %s26, 1
          %s159 = scalar_lea.sflag [#allocation3], %s158
          %s160 = sand.u32 %s26, 1
          %s161 = smul.addr %s160, 64
          %s162 = scalar_lea.vmem [#allocation2], %s161
          %s163 = smul.u32 8, %s16
          %165 = vsyncadd %s159, 0
          %s166 = smul.addr %s163, 8
          %s167 = scalar_lea.hbm %s0, %s166
          %s168 = sshll.u32 %s167, 4
          %s169 = int_to_ptr.hbm [resolvable:$true] %s168
          %s170 = sshll.u32 %s162, 4
          %s171 = int_to_ptr.vmem [resolvable:$true] %s170
          %176 = dma.hbm_to_vmem [thread:$0]  %s169, 1024, %s171, %s159, 128, 128, 8
        $region28: #{fact_qkv_forward.1} parent=23 // pred_fallthru
          _
      $region24: #{fact_qkv_forward.1} parent=5 // pred_fallthru
        _
      %p177 = scmp.le.s32.totalorder 1, %s16
      %p178 = scmp.lt.s32.totalorder %s16, 3
      %p179 = pnand %p177, %p178
      %p180 = pneg %p179
      // Predicated region
      $region29: #{fact_qkv_forward.1} parent=5 // pred_check
        _
      $region30: #{fact_qkv_forward.1} parent=5 // pred_check_branch
        %182 = sbr.rel (%p179) target = $region32
      $region31: #{fact_qkv_forward.1} parent=5 // pred_region
        %s183 = ssub.s32 %s16, 1
        %s184 = sand.u32 %s29, 1
        %s185 = scalar_lea.sflag [#allocation3], %s184
        %s186 = sand.u32 %s29, 1
        %s187 = smul.addr %s186, 64
        %s188 = scalar_lea.vmem [#allocation2], %s187
        // Predicated region
        $region33: #{fact_qkv_forward.1} parent=31 // pred_check
          %p189 = pneg %p42
        $region34: #{fact_qkv_forward.1} parent=31 // pred_check_branch
          %191 = sbr.rel (%p189) target = $region36
        $region35: #{fact_qkv_forward.1} parent=31 // pred_region
          %193 = dma.done %s185, 1024
        $region36: #{fact_qkv_forward.1} parent=31 // pred_fallthru
          _
        // Predicated region
        $region37: #{fact_qkv_forward.1} parent=31 // pred_check
          %p194 = pneg %p63
        $region38: #{fact_qkv_forward.1} parent=31 // pred_check_branch
          %196 = sbr.rel (%p194) target = $region40
        $region39: #{fact_qkv_forward.1} parent=31 // pred_region
          %198 = dma.done [#allocation6], 3072
        $region40: #{fact_qkv_forward.1} parent=31 // pred_fallthru
          _
        // Predicated region
        $region41: #{fact_qkv_forward.1} parent=31 // pred_check
          %p199 = pneg %p84
        $region42: #{fact_qkv_forward.1} parent=31 // pred_check_branch
          %201 = sbr.rel (%p199) target = $region44
        $region43: #{fact_qkv_forward.1} parent=31 // pred_region
          %203 = dma.done [#allocation6], 48
        $region44: #{fact_qkv_forward.1} parent=31 // pred_fallthru
          _
        %s204 = sand.u32 %s29, 1
        %s205 = scalar_lea.sflag [#allocation3], %s204
        %s206 = sand.u32 %s29, 1
        %s207 = smul.addr %s206, 64
        %s208 = scalar_lea.vmem [#allocation2], %s207
        %p209 = pneg %p42
        %p210 = pneg %p39
        %p211 = pneg %p63
        %p212 = pneg %p60
        %p213 = pneg %p84
        %p214 = pneg %p81
        %p215 = pneg %p110
        %p216 = pneg %p107
        %s217 = sand.u32 %s97, 1
        %s218 = scalar_lea.sflag [#allocation4], %s217
        %s219 = sand.u32 %s97, 1
        %s220 = smul.addr %s219, 192
        %s221 = scalar_lea.vmem [#allocation8], %s220
        %s222 = smul.u32 8, %s21
        %s223 = smul.u32 8, %s21
        %v224 = vld [vmem:[%s188] sm:$0xff]
        %v225 = vld [vmem:[%s188 + $0x8] sm:$0xff]
        %v226 = vld [vmem:[%s188 + $0x10] sm:$0xff]
        %v227 = vld [vmem:[%s188 + $0x18] sm:$0xff]
        %v228 = vld [vmem:[%s188 + $0x20] sm:$0xff]
        %v229 = vld [vmem:[%s188 + $0x28] sm:$0xff]
        %v230 = vld [vmem:[%s188 + $0x30] sm:$0xff]
        %v231 = vld [vmem:[%s188 + $0x38] sm:$0xff]
        %v232 = vpack.c.bf16 %v225, %v224
        %v233 = vpack.c.bf16 %v227, %v226
        %v234 = vpack.c.bf16 %v229, %v228
        %v235 = vpack.c.bf16 %v231, %v230
        %v236 = vld [vmem:[#allocation5] sm:$0xff]
        %v237 = vld [vmem:[#allocation5 + $0x8] sm:$0xf]
        %v238 = vld [vmem:[#allocation5 + $0xc] sm:$0xff]
        %v239 = vld [vmem:[#allocation5 + $0x14] sm:$0xf]
        %v240 = vld [vmem:[#allocation5 + $0x18] sm:$0xff]
        %v241 = vld [vmem:[#allocation5 + $0x20] sm:$0xf]
        %v242 = vld [vmem:[#allocation5 + $0x24] sm:$0xff]
        %v243 = vld [vmem:[#allocation5 + $0x2c] sm:$0xf]
        %v244 = vld [vmem:[#allocation5 + $0x30] sm:$0xff]
        %v245 = vld [vmem:[#allocation5 + $0x38] sm:$0xf]
        %v246 = vld [vmem:[#allocation5 + $0x3c] sm:$0xff]
        %v247 = vld [vmem:[#allocation5 + $0x44] sm:$0xf]
        %v248 = vld [vmem:[#allocation5 + $0x48] sm:$0xff]
        %v249 = vld [vmem:[#allocation5 + $0x50] sm:$0xf]
        %v250 = vld [vmem:[#allocation5 + $0x54] sm:$0xff]
        %v251 = vld [vmem:[#allocation5 + $0x5c] sm:$0xf]
        %v252 = vld [vmem:[#allocation5 + $0x60] sm:$0xff]
        %v253 = vld [vmem:[#allocation5 + $0x68] sm:$0xf]
        %v254 = vld [vmem:[#allocation5 + $0x6c] sm:$0xff]
        %v255 = vld [vmem:[#allocation5 + $0x74] sm:$0xf]
        %v256 = vld [vmem:[#allocation5 + $0x78] sm:$0xff]
        %v257 = vld [vmem:[#allocation5 + $0x80] sm:$0xf]
        %v258 = vld [vmem:[#allocation5 + $0x84] sm:$0xff]
        %v259 = vld [vmem:[#allocation5 + $0x8c] sm:$0xf]
        %v260 = vld [vmem:[#allocation5 + $0x90] sm:$0xff]
        %v261 = vld [vmem:[#allocation5 + $0x98] sm:$0xf]
        %v262 = vld [vmem:[#allocation5 + $0x9c] sm:$0xff]
        %v263 = vld [vmem:[#allocation5 + $0xa4] sm:$0xf]
        %v264 = vld [vmem:[#allocation5 + $0xa8] sm:$0xff]
        %v265 = vld [vmem:[#allocation5 + $0xb0] sm:$0xf]
        %v266 = vld [vmem:[#allocation5 + $0xb4] sm:$0xff]
        %v267 = vld [vmem:[#allocation5 + $0xbc] sm:$0xf]
        %v268 = vld [vmem:[#allocation7] sm:$0x7]
        %v270 = vperm.slane %v268, 0
        %v271 = vperm.slane %v268, 1
        %v272 = vperm.slane %v268, 2
        %v308 = vunpack.c.l.b16 %v236
        %v309 = vunpack.c.h.b16 %v236
        %v310 = vunpack.c.l.b16 %v237
        %v311 = vunpack.c.l.b16 %v238
        %v312 = vunpack.c.h.b16 %v238
        %v313 = vunpack.c.l.b16 %v239
        %v314 = vunpack.c.l.b16 %v240
        %v315 = vunpack.c.h.b16 %v240
        %v316 = vunpack.c.l.b16 %v241
        %v317 = vunpack.c.l.b16 %v242
        %v318 = vunpack.c.h.b16 %v242
        %v319 = vunpack.c.l.b16 %v243
        %v320 = vunpack.c.l.b16 %v244
        %v321 = vunpack.c.h.b16 %v244
        %v322 = vunpack.c.l.b16 %v245
        %v323 = vunpack.c.l.b16 %v246
        %v324 = vunpack.c.h.b16 %v246
        %v325 = vunpack.c.l.b16 %v247
        %v326 = vunpack.c.l.b16 %v248
        %v327 = vunpack.c.h.b16 %v248
        %v328 = vunpack.c.l.b16 %v249
        %v329 = vunpack.c.l.b16 %v250
        %v330 = vunpack.c.h.b16 %v250
        %v331 = vunpack.c.l.b16 %v251
        %v332 = vunpack.c.l.b16 %v252
        %v333 = vunpack.c.h.b16 %v252
        %v334 = vunpack.c.l.b16 %v253
        %v335 = vunpack.c.l.b16 %v254
        %v336 = vunpack.c.h.b16 %v254
        %v337 = vunpack.c.l.b16 %v255
        %v338 = vunpack.c.l.b16 %v256
        %v339 = vunpack.c.h.b16 %v256
        %v340 = vunpack.c.l.b16 %v257
        %v341 = vunpack.c.l.b16 %v258
        %v342 = vunpack.c.h.b16 %v258
        %v343 = vunpack.c.l.b16 %v259
        %v344 = vunpack.c.l.b16 %v260
        %v345 = vunpack.c.h.b16 %v260
        %v346 = vunpack.c.l.b16 %v261
        %v347 = vunpack.c.l.b16 %v262
        %v348 = vunpack.c.h.b16 %v262
        %v349 = vunpack.c.l.b16 %v263
        %v350 = vunpack.c.l.b16 %v264
        %v351 = vunpack.c.h.b16 %v264
        %v352 = vunpack.c.l.b16 %v265
        %v353 = vunpack.c.l.b16 %v266
        %v354 = vunpack.c.h.b16 %v266
        %v355 = vunpack.c.l.b16 %v267
        %v356 = vpack.c.b16 %v311, %v308
        %v357 = vpack.c.b16 %v312, %v309
        %v358 = vpack.c.b16 %v313, %v310
        %v359 = vpack.c.b16 %v317, %v314
        %v360 = vpack.c.b16 %v318, %v315
        %v361 = vpack.c.b16 %v319, %v316
        %v362 = vpack.c.b16 %v323, %v320
        %v363 = vpack.c.b16 %v324, %v321
        %v364 = vpack.c.b16 %v325, %v322
        %v365 = vpack.c.b16 %v329, %v326
        %v366 = vpack.c.b16 %v330, %v327
        %v367 = vpack.c.b16 %v331, %v328
        %v368 = vpack.c.b16 %v335, %v332
        %v369 = vpack.c.b16 %v336, %v333
        %v370 = vpack.c.b16 %v337, %v334
        %v371 = vpack.c.b16 %v341, %v338
        %v372 = vpack.c.b16 %v342, %v339
        %v373 = vpack.c.b16 %v343, %v340
        %v374 = vpack.c.b16 %v347, %v344
        %v375 = vpack.c.b16 %v348, %v345
        %v376 = vpack.c.b16 %v349, %v346
        %v377 = vpack.c.b16 %v353, %v350
        %v378 = vpack.c.b16 %v354, %v351
        %v379 = vpack.c.b16 %v355, %v352
        %404 = vmatpush.bf16.msra.mxu0 %v377
        %405 = vmatpush.bf16.msra.mxu0 %v374
        %406 = vmatpush.bf16.msra.mxu0 %v371
        %407 = vmatpush.bf16.msra.mxu0 %v368
        %408 = vmatpush.bf16.msra.mxu0 %v365
        %409 = vmatpush.bf16.msra.mxu0 %v362
        %410 = vmatpush.bf16.msra.mxu0 %v359
        %411 = vmatpush.bf16.msra.mxu0 %v356
        %412 = vmatmul.bf16.gmra.mxu0 %v232
        %v413 = vpop.f32.mrf.mxu0
        %v414 = vadd.f32 %v270, %v413
        %v415 = vpop.f32.mrf.mxu0
        %v416 = vadd.f32 %v270, %v415
        %417 = vmatmul.bf16.gmra.mxu0 %v233
        %v418 = vpop.f32.mrf.mxu0
        %v419 = vadd.f32 %v270, %v418
        %v420 = vpop.f32.mrf.mxu0
        %v421 = vadd.f32 %v270, %v420
        %422 = vmatmul.bf16.gmra.mxu0 %v234
        %v423 = vpop.f32.mrf.mxu0
        %v424 = vadd.f32 %v270, %v423
        %v425 = vpop.f32.mrf.mxu0
        %v426 = vadd.f32 %v270, %v425
        %427 = vmatmul.bf16.gmra.mxu0 %v235
        %v428 = vpop.f32.mrf.mxu0
        %v429 = vadd.f32 %v270, %v428
        %v430 = vpop.f32.mrf.mxu0
        %v431 = vadd.f32 %v270, %v430
        %432 = vdwg.mxu0
        %433 = vmatpush.bf16.msra.mxu0 %v378
        %434 = vmatpush.bf16.msra.mxu0 %v375
        %435 = vmatpush.bf16.msra.mxu0 %v372
        %436 = vmatpush.bf16.msra.mxu0 %v369
        %437 = vmatpush.bf16.msra.mxu0 %v366
        %438 = vmatpush.bf16.msra.mxu0 %v363
        %439 = vmatpush.bf16.msra.mxu0 %v360
        %440 = vmatpush.bf16.msra.mxu0 %v357
        %441 = vmatmul.bf16.gmra.mxu0 %v232
        %v442 = vpop.f32.mrf.mxu0
        %v443 = vadd.f32 %v271, %v442
        %v444 = vpop.f32.mrf.mxu0
        %v445 = vadd.f32 %v271, %v444
        %446 = vmatmul.bf16.gmra.mxu0 %v233
        %v447 = vpop.f32.mrf.mxu0
        %v448 = vadd.f32 %v271, %v447
        %v449 = vpop.f32.mrf.mxu0
        %v450 = vadd.f32 %v271, %v449
        %451 = vmatmul.bf16.gmra.mxu0 %v234
        %v452 = vpop.f32.mrf.mxu0
        %v453 = vadd.f32 %v271, %v452
        %v454 = vpop.f32.mrf.mxu0
        %v455 = vadd.f32 %v271, %v454
        %456 = vmatmul.bf16.gmra.mxu0 %v235
        %v457 = vpop.f32.mrf.mxu0
        %v458 = vadd.f32 %v271, %v457
        %v459 = vpop.f32.mrf.mxu0
        %v460 = vadd.f32 %v271, %v459
        %461 = vdwg.mxu0
        %462 = vmatpush.bf16.msra.mxu0 %v379
        %463 = vmatpush.bf16.msra.mxu0 %v376
        %464 = vmatpush.bf16.msra.mxu0 %v373
        %465 = vmatpush.bf16.msra.mxu0 %v370
        %466 = vmatpush.bf16.msra.mxu0 %v367
        %467 = vmatpush.bf16.msra.mxu0 %v364
        %468 = vmatpush.bf16.msra.mxu0 %v361
        %469 = vmatpush.bf16.msra.mxu0 %v358
        %470 = vmatmul.bf16.gmra.mxu0 %v232
        %v471 = vpop.f32.mrf.mxu0
        %v472 = vadd.f32 %v272, %v471
        %v473 = vpop.f32.mrf.mxu0
        %v474 = vadd.f32 %v272, %v473
        %475 = vmatmul.bf16.gmra.mxu0 %v233
        %v476 = vpop.f32.mrf.mxu0
        %v477 = vadd.f32 %v272, %v476
        %v478 = vpop.f32.mrf.mxu0
        %v479 = vadd.f32 %v272, %v478
        %480 = vmatmul.bf16.gmra.mxu0 %v234
        %v481 = vpop.f32.mrf.mxu0
        %v482 = vadd.f32 %v272, %v481
        %v483 = vpop.f32.mrf.mxu0
        %v484 = vadd.f32 %v272, %v483
        %485 = vmatmul.bf16.gmra.mxu0 %v235
        %v486 = vpop.f32.mrf.mxu0
        %v487 = vadd.f32 %v272, %v486
        %v488 = vpop.f32.mrf.mxu0
        %v489 = vadd.f32 %v272, %v488
        %490 = vdwg.mxu0
        %491 = vst [vmem:[%s221] sm:$0xff] %v414
        %492 = vst [vmem:[%s221 + $0x8] sm:$0xff] %v443
        %493 = vst [vmem:[%s221 + $0x10] sm:$0xff] %v472
        %494 = vst [vmem:[%s221 + $0x18] sm:$0xff] %v416
        %495 = vst [vmem:[%s221 + $0x20] sm:$0xff] %v445
        %496 = vst [vmem:[%s221 + $0x28] sm:$0xff] %v474
        %497 = vst [vmem:[%s221 + $0x30] sm:$0xff] %v419
        %498 = vst [vmem:[%s221 + $0x38] sm:$0xff] %v448
        %499 = vst [vmem:[%s221 + $0x40] sm:$0xff] %v477
        %500 = vst [vmem:[%s221 + $0x48] sm:$0xff] %v421
        %501 = vst [vmem:[%s221 + $0x50] sm:$0xff] %v450
        %502 = vst [vmem:[%s221 + $0x58] sm:$0xff] %v479
        %503 = vst [vmem:[%s221 + $0x60] sm:$0xff] %v424
        %504 = vst [vmem:[%s221 + $0x68] sm:$0xff] %v453
        %505 = vst [vmem:[%s221 + $0x70] sm:$0xff] %v482
        %506 = vst [vmem:[%s221 + $0x78] sm:$0xff] %v426
        %507 = vst [vmem:[%s221 + $0x80] sm:$0xff] %v455
        %508 = vst [vmem:[%s221 + $0x88] sm:$0xff] %v484
        %509 = vst [vmem:[%s221 + $0x90] sm:$0xff] %v429
        %510 = vst [vmem:[%s221 + $0x98] sm:$0xff] %v458
        %511 = vst [vmem:[%s221 + $0xa0] sm:$0xff] %v487
        %512 = vst [vmem:[%s221 + $0xa8] sm:$0xff] %v431
        %513 = vst [vmem:[%s221 + $0xb0] sm:$0xff] %v460
        %514 = vst [vmem:[%s221 + $0xb8] sm:$0xff] %v489
        %s515 = sand.u32 %s97, 1
        %s516 = scalar_lea.sflag [#allocation4], %s515
        %s517 = sand.u32 %s97, 1
        %s518 = smul.addr %s517, 192
        %s519 = scalar_lea.vmem [#allocation8], %s518
        // Predicated region
        $region45: #{fact_qkv_forward.1} parent=31 // pred_check
          %p520 = pneg %p107
        $region46: #{fact_qkv_forward.1} parent=31 // pred_check_branch
          %522 = sbr.rel (%p520) target = $region48
        $region47: #{fact_qkv_forward.1} parent=31 // pred_region
          %s523 = smul.u32 8, %s21
          %525 = vsyncadd %s516, 0
          %s526 = smul.addr %s523, 3
          %s527 = smul.addr %s526, 8
          %s528 = scalar_lea.hbm %s3, %s527
          %s529 = sshll.u32 %s519, 4
          %s530 = int_to_ptr.vmem [resolvable:$true] %s529
          %s531 = sshll.u32 %s528, 4
          %s532 = int_to_ptr.hbm [resolvable:$true] %s531
          %537 = dma.vmem_to_hbm [thread:$0]  %s530, 3072, %s532, %s516, 384, 384, 24
        $region48: #{fact_qkv_forward.1} parent=31 // pred_fallthru
          _
      $region32: #{fact_qkv_forward.1} parent=5 // pred_fallthru
        _
      %p538 = scmp.le.s32.totalorder 2, %s16
      // Predicated region
      $region49: #{fact_qkv_forward.1} parent=5 // pred_check
        %p539 = pneg %p538
      $region50: #{fact_qkv_forward.1} parent=5 // pred_check_branch
        %541 = sbr.rel (%p539) target = $region52
      $region51: #{fact_qkv_forward.1} parent=5 // pred_region
        %s542 = ssub.s32 %s16, 2
        // Predicated region
        $region53: #{fact_qkv_forward.1} parent=51 // pred_check
          %p543 = pneg %p113
        $region54: #{fact_qkv_forward.1} parent=51 // pred_check_branch
          %545 = sbr.rel (%p543) target = $region56
        $region55: #{fact_qkv_forward.1} parent=51 // pred_region
          %s546 = sand.u32 %s98, 1
          %s547 = scalar_lea.sflag [#allocation4], %s546
          %s548 = sand.u32 %s98, 1
          %s549 = smul.addr %s548, 192
          %s550 = scalar_lea.vmem [#allocation8], %s549
          %552 = dma.done %s547, 3072
        $region56: #{fact_qkv_forward.1} parent=51 // pred_fallthru
          _
      $region52: #{fact_qkv_forward.1} parent=5 // pred_fallthru
        _
    $region6: #{fact_qkv_forward.1} parent=1 // loop_footer
      %s20 = sadd.s32 1, %s16
    $region7: #{fact_qkv_forward.1} parent=1 // loop_footer_branch
      %15 = sbr.rel target = $region3
    $region8: #{fact_qkv_forward.1} parent=1 // loop_exit
      _
    %553 = vsyncpa [#allocation3], 1
    %s554 = scalar_lea.sflag [#allocation3], 1
    %555 = vsyncpa %s554, 1
    %556 = vsyncpa [#allocation6], 1
    %557 = vsyncpa [#allocation4], 1
    %s558 = scalar_lea.sflag [#allocation4], 1
    %559 = vsyncpa %s558, 1

</llo_original>
